<compile_context>
chip_gen: v7x
topology: tpu7x:2x2x1
jax: 0.10.0
libtpu: 0.0.40
codegen_flags: <defaults>
</compile_context>

<pallas_src>
import functools

import jax
import jax.numpy as jnp
from jax.experimental import pallas as pl
from jax.experimental.pallas import tpu as pltpu

_BF16_SUB = 16   # bf16 packs 16 rows per vreg


def _round_up(x, m):
    return ((x + m - 1) // m) * m


# ---------------------------------------------------------------------------
# Kernel: whole MLP fused for one row tile. Weights/biases are resident blocks.
# ---------------------------------------------------------------------------
def _mlp_kernel(num_layers, x_ref, *refs):
    """refs = (w_0, b_0, ..., w_{L-1}, b_{L-1}, out_ref)."""
    out_ref = refs[-1]
    params = refs[:-1]
    h = x_ref[...].astype(jnp.bfloat16)            # cast in VMEM, not via HBM
    for i in range(num_layers):
        w = params[2 * i][...]                     # bf16 (d_i, d_{i+1})
        b = params[2 * i + 1][...]                 # f32  (1,  d_{i+1})
        acc = jnp.dot(h, w, preferred_element_type=jnp.float32) + b
        if i < num_layers - 1:                     # F.relu on all but last layer
            h = jnp.maximum(acc, 0.0).astype(jnp.bfloat16)   # bf16 carry
        else:
            h = acc                                # final layer stays f32
    out_ref[...] = h.astype(out_ref.dtype)


# ---------------------------------------------------------------------------
# One-time parameter prep (do this at init, NOT per forward call).
# ---------------------------------------------------------------------------
def prepare_mlp_params(weights, biases):
    """weights[i]: (d_i, d_{i+1}) f32; biases[i]: (d_{i+1},) f32."""
    w_bf = tuple(jnp.asarray(w, jnp.bfloat16) for w in weights)
    b_f32 = tuple(jnp.asarray(b, jnp.float32).reshape(1, -1) for b in biases)
    return w_bf, b_f32


# ---------------------------------------------------------------------------
# Forward wrapper: one pallas_call, rows tiled only when M is genuinely large.
# ---------------------------------------------------------------------------
def mlp_pallas(x_flat, w_bf, b_f32, *, tm_max=256):
    M, d_in = x_flat.shape
    num_layers = len(w_bf)
    d_out = w_bf[-1].shape[1]
    out_dtype = x_flat.dtype

    # Row tiling: single grid step unless M exceeds tm_max.
    if M <= tm_max:
        tm, m_pad = M, M
    else:
        tm = _round_up(tm_max, _BF16_SUB)
        m_pad = _round_up(M, tm)
    grid_steps = m_pad // tm

    x_in = x_flat
    if m_pad != M:  # pad rows only when the grid needs it
        x_in = jnp.pad(x_flat, ((0, m_pad - M), (0, 0)))

    # Resident (constant-index) parameter blocks; single-buffer them when the
    # grid actually pipelines, to halve their VMEM footprint.
    if grid_steps > 1:
        def param_spec(shape):
            return pl.BlockSpec(shape, lambda i: (0, 0),
                                pipeline_mode=pl.Buffered(1))
    else:
        def param_spec(shape):
            return pl.BlockSpec(shape, lambda i: (0, 0))

    in_specs = [pl.BlockSpec((tm, d_in), lambda i: (i, 0))]
    args = [x_in]
    for w, b in zip(w_bf, b_f32):
        in_specs.append(param_spec(w.shape))
        in_specs.append(param_spec(b.shape))
        args.extend([w, b])
    out_specs = pl.BlockSpec((tm, d_out), lambda i: (i, 0))

    # Cost estimate + explicit VMEM budget.
    flops = 2 * m_pad * sum(w.shape[0] * w.shape[1] for w in w_bf)
    param_bytes = (sum(w.size * 2 for w in w_bf)
                   + sum(b.size * 4 for b in b_f32))
    io_bytes = (x_in.size * x_in.dtype.itemsize
                + m_pad * d_out * jnp.dtype(out_dtype).itemsize)
    max_width = max([d_in, d_out] + [w.shape[1] for w in w_bf])
    tile_bytes = tm * (d_in * x_in.dtype.itemsize
                       + d_out * jnp.dtype(out_dtype).itemsize
                       + 6 * max_width)            # bf16 h + f32 acc, slack
    param_mult = 1 if grid_steps > 1 else 2        # Buffered(1) vs default 2x
    vmem_limit = int(min(max(2 * (param_mult * param_bytes + 2 * tile_bytes),
                             16 * 2**20),
                         64 * 2**20))

    y = pl.pallas_call(
        functools.partial(_mlp_kernel, num_layers),
        out_shape=jax.ShapeDtypeStruct((m_pad, d_out), out_dtype),
        grid=(grid_steps,),
        in_specs=in_specs,
        out_specs=out_specs,
        compiler_params=pltpu.CompilerParams(
            dimension_semantics=("parallel",),
            vmem_limit_bytes=vmem_limit),
        cost_estimate=pl.CostEstimate(
            flops=flops, transcendentals=0,
            bytes_accessed=param_bytes + io_bytes),
    )(*args)

    return y if m_pad == M else y[:M]


def mlp_forward(x, prepared, *, tm_max=256):
    """Mirror of MLP.forward for arbitrary leading dims (like nn.Linear)."""
    w_bf, b_f32 = prepared
    lead = x.shape[:-1]
    d_out = w_bf[-1].shape[1]
    x_flat = x.reshape(-1, x.shape[-1])
    y_flat = mlp_pallas(x_flat, w_bf, b_f32, tm_max=tm_max)
    return y_flat.reshape(*lead, d_out)


def init_mlp_params(key, input_dim, hidden_dim, output_dim, num_layers):
    """Deterministic synthetic params. Weight stored (in, out) so kernel does x @ W."""
    h = [hidden_dim] * (num_layers - 1)
    dims_in = [input_dim] + h
    dims_out = h + [output_dim]
    weights, biases = [], []
    for n, k in zip(dims_in, dims_out):
        key, kw, kb = jax.random.split(key, 3)
        bound = 1.0 / jnp.sqrt(n)
        weights.append(jax.random.uniform(kw, (n, k), jnp.float32, -bound, bound))
        biases.append(jax.random.uniform(kb, (k,), jnp.float32, -bound, bound))
    return weights, biases


if __name__ == "__main__":
    # Shapes consistent with the predictor's use of MLP:
    # x: (seq=8, batch=2, input_dim=32), hidden=64, output=16, num_layers=3
    input_dim, hidden_dim, output_dim, num_layers = 32, 64, 16, 3
    key = jax.random.PRNGKey(0)
    key, kx = jax.random.split(key)
    x = jax.random.normal(kx, (8, 2, input_dim), jnp.float32)

    weights, biases = init_mlp_params(key, input_dim, hidden_dim,
                                      output_dim, num_layers)
    prepared = prepare_mlp_params(weights, biases)   # one-time, outside forward

    fwd = jax.jit(lambda xx: mlp_forward(xx, prepared))
    y = jax.block_until_ready(fwd(x))

    # Pure-JAX f32 reference (kernel matmuls are bf16 with f32 accumulation,
    # hence the relaxed ~2e-2 tolerance).
    def ref_forward(x, weights, biases):
        h = x
        for i, (w, b) in enumerate(zip(weights, biases)):
            h = h @ w + b
            if i < len(weights) - 1:
                h = jnp.maximum(h, 0.0)
        return h

    y_ref = ref_forward(x, weights, biases)
    assert y.shape == (8, 2, output_dim)
    assert jnp.allclose(y, y_ref, atol=2e-2, rtol=2e-2), float(
        jnp.max(jnp.abs(y - y_ref)))

    print("KERNEL_OK")
</pallas_src>

<mosaic_0001>
module attributes {stable_mosaic.version = 11 : i64} {
  func.func @_mlp_kernel(%arg0: i32, %arg1: memref<16x32xf32, #tpu.memory_space<vmem>>, %arg2: memref<32x64xbf16, #tpu.memory_space<vmem>>, %arg3: memref<1x64xf32, #tpu.memory_space<vmem>>, %arg4: memref<64x64xbf16, #tpu.memory_space<vmem>>, %arg5: memref<1x64xf32, #tpu.memory_space<vmem>>, %arg6: memref<64x16xbf16, #tpu.memory_space<vmem>>, %arg7: memref<1x16xf32, #tpu.memory_space<vmem>>, %arg8: memref<16x16xf32, #tpu.memory_space<vmem>>) attributes {dimension_semantics = [#tpu.dimension_semantics<parallel>], iteration_bounds = array<i64: 1>, scalar_prefetch = 0 : i64, scratch_operands = 0 : i64, tpu.core_type = #tpu.core_type<tc>, window_params = [{transform_indices = @transform_0, window_bounds = array<i64: 16, 32>}, {pipeline_mode = #tpu.pipeline_mode<synchronous>, transform_indices = @transform_1, window_bounds = array<i64: 32, 64>}, {pipeline_mode = #tpu.pipeline_mode<synchronous>, transform_indices = @transform_2, window_bounds = array<i64: 1, 64>}, {pipeline_mode = #tpu.pipeline_mode<synchronous>, transform_indices = @transform_3, window_bounds = array<i64: 64, 64>}, {pipeline_mode = #tpu.pipeline_mode<synchronous>, transform_indices = @transform_4, window_bounds = array<i64: 1, 64>}, {pipeline_mode = #tpu.pipeline_mode<synchronous>, transform_indices = @transform_5, window_bounds = array<i64: 64, 16>}, {pipeline_mode = #tpu.pipeline_mode<synchronous>, transform_indices = @transform_6, window_bounds = array<i64: 1, 16>}, {transform_indices = @transform_7, window_bounds = array<i64: 16, 16>}]} {
    %c0 = arith.constant 0 : index
    %c0_0 = arith.constant 0 : index
    %0 = vector.load %arg1[%c0, %c0_0] : memref<16x32xf32, #tpu.memory_space<vmem>>, vector<16x32xf32>
    %1 = arith.truncf %0 : vector<16x32xf32> to vector<16x32xbf16>
    %c0_1 = arith.constant 0 : index
    %c0_2 = arith.constant 0 : index
    %2 = vector.load %arg2[%c0_1, %c0_2] : memref<32x64xbf16, #tpu.memory_space<vmem>>, vector<32x64xbf16>
    %c0_3 = arith.constant 0 : index
    %c0_4 = arith.constant 0 : index
    %3 = vector.load %arg3[%c0_3, %c0_4] : memref<1x64xf32, #tpu.memory_space<vmem>>, vector<1x64xf32>
    %cst = arith.constant dense<0.000000e+00> : vector<16x64xf32>
    %4 = tpu.matmul %1, %2, %cst {dimension_numbers = #tpu.dot_dimension_numbers<[1], [0], [0], [1], [0, 0, 1, 1], [], []>} : vector<16x32xbf16>, vector<32x64xbf16>, vector<16x64xf32> -> vector<16x64xf32>
    %5 = vector.broadcast %3 : vector<1x64xf32> to vector<16x64xf32>
    %6 = arith.addf %4, %5 : vector<16x64xf32>
    %cst_5 = arith.constant 0.000000e+00 : f32
    %7 = vector.broadcast %cst_5 : f32 to vector<16x64xf32>
    %8 = arith.maximumf %6, %7 : vector<16x64xf32>
    %9 = arith.truncf %8 : vector<16x64xf32> to vector<16x64xbf16>
    %c0_6 = arith.constant 0 : index
    %c0_7 = arith.constant 0 : index
    %10 = vector.load %arg4[%c0_6, %c0_7] : memref<64x64xbf16, #tpu.memory_space<vmem>>, vector<64x64xbf16>
    %c0_8 = arith.constant 0 : index
    %c0_9 = arith.constant 0 : index
    %11 = vector.load %arg5[%c0_8, %c0_9] : memref<1x64xf32, #tpu.memory_space<vmem>>, vector<1x64xf32>
    %cst_10 = arith.constant dense<0.000000e+00> : vector<16x64xf32>
    %12 = tpu.matmul %9, %10, %cst_10 {dimension_numbers = #tpu.dot_dimension_numbers<[1], [0], [0], [1], [0, 0, 1, 1], [], []>} : vector<16x64xbf16>, vector<64x64xbf16>, vector<16x64xf32> -> vector<16x64xf32>
    %13 = vector.broadcast %11 : vector<1x64xf32> to vector<16x64xf32>
    %14 = arith.addf %12, %13 : vector<16x64xf32>
    %cst_11 = arith.constant 0.000000e+00 : f32
    %15 = vector.broadcast %cst_11 : f32 to vector<16x64xf32>
    %16 = arith.maximumf %14, %15 : vector<16x64xf32>
    %17 = arith.truncf %16 : vector<16x64xf32> to vector<16x64xbf16>
    %c0_12 = arith.constant 0 : index
    %c0_13 = arith.constant 0 : index
    %18 = vector.load %arg6[%c0_12, %c0_13] : memref<64x16xbf16, #tpu.memory_space<vmem>>, vector<64x16xbf16>
    %c0_14 = arith.constant 0 : index
    %c0_15 = arith.constant 0 : index
    %19 = vector.load %arg7[%c0_14, %c0_15] : memref<1x16xf32, #tpu.memory_space<vmem>>, vector<1x16xf32>
    %cst_16 = arith.constant dense<0.000000e+00> : vector<16x16xf32>
    %20 = tpu.matmul %17, %18, %cst_16 {dimension_numbers = #tpu.dot_dimension_numbers<[1], [0], [0], [1], [0, 0, 1, 1], [], []>} : vector<16x64xbf16>, vector<64x16xbf16>, vector<16x16xf32> -> vector<16x16xf32>
    %21 = vector.broadcast %19 : vector<1x16xf32> to vector<16x16xf32>
    %22 = arith.addf %20, %21 : vector<16x16xf32>
    %c0_17 = arith.constant 0 : index
    %c0_18 = arith.constant 0 : index
    %23 = vector.load %arg8[%c0_17, %c0_18] : memref<16x16xf32, #tpu.memory_space<vmem>>, vector<16x16xf32>
    tpu.vector_store %arg8[%c0_17, %c0_18], %22 {strides = array<i32>} : memref<16x16xf32, #tpu.memory_space<vmem>>, vector<16x16xf32>,
    return
  }
  func.func @transform_0(%arg0: i32) -> (i32, i32) {
    %c0_i32 = arith.constant 0 : i32
    %c0_i32_0 = arith.constant 0 : i32
    return %arg0, %c0_i32 : i32, i32
  }
  func.func @transform_1(%arg0: i32) -> (i32, i32) {
    %c0_i32 = arith.constant 0 : i32
    %c0_i32_0 = arith.constant 0 : i32
    %c0_i32_1 = arith.constant 0 : i32
    return %c0_i32, %c0_i32_0 : i32, i32
  }
  func.func @transform_2(%arg0: i32) -> (i32, i32) {
    %c0_i32 = arith.constant 0 : i32
    %c0_i32_0 = arith.constant 0 : i32
    %c0_i32_1 = arith.constant 0 : i32
    return %c0_i32, %c0_i32_0 : i32, i32
  }
  func.func @transform_3(%arg0: i32) -> (i32, i32) {
    %c0_i32 = arith.constant 0 : i32
    %c0_i32_0 = arith.constant 0 : i32
    %c0_i32_1 = arith.constant 0 : i32
    return %c0_i32, %c0_i32_0 : i32, i32
  }
  func.func @transform_4(%arg0: i32) -> (i32, i32) {
    %c0_i32 = arith.constant 0 : i32
    %c0_i32_0 = arith.constant 0 : i32
    %c0_i32_1 = arith.constant 0 : i32
    return %c0_i32, %c0_i32_0 : i32, i32
  }
  func.func @transform_5(%arg0: i32) -> (i32, i32) {
    %c0_i32 = arith.constant 0 : i32
    %c0_i32_0 = arith.constant 0 : i32
    %c0_i32_1 = arith.constant 0 : i32
    return %c0_i32, %c0_i32_0 : i32, i32
  }
  func.func @transform_6(%arg0: i32) -> (i32, i32) {
    %c0_i32 = arith.constant 0 : i32
    %c0_i32_0 = arith.constant 0 : i32
    %c0_i32_1 = arith.constant 0 : i32
    return %c0_i32, %c0_i32_0 : i32, i32
  }
  func.func @transform_7(%arg0: i32) -> (i32, i32) {
    %c0_i32 = arith.constant 0 : i32
    %c0_i32_0 = arith.constant 0 : i32
    return %arg0, %c0_i32 : i32, i32
  }
}

</mosaic_0001>

<llo_original>
// kernel: _lambda_.1
$region0: #{_lambda_.1}
  #allocation0 [shape = 'u32[]', space=smem, size = 0x4, offset = 0x4, fixed_abs, tag = 'smem constant byte address 0x4 - core index']
  #allocation1 [shape = 'u32[144,128]{1,0:T(1,128)}', space=vmem, size = 0x12000, scoped, tag = 'internal scratch']
  %s0 = inlined_call_operand.hbm [shape: f32[16,32], index: 0, kind: input, shape index: {}]
  %s1 = inlined_call_operand.hbm [shape: bf16[32,64], index: 1, kind: input, shape index: {}]
  %s2 = inlined_call_operand.vmem [shape: f32[1,64], index: 2, kind: input, shape index: {}]
  %s3 = inlined_call_operand.hbm [shape: bf16[64,64], index: 3, kind: input, shape index: {}]
  %s4 = inlined_call_operand.vmem [shape: f32[1,64], index: 4, kind: input, shape index: {}]
  %s5 = inlined_call_operand.vmem [shape: bf16[64,16], index: 5, kind: input, shape index: {}]
  %s6 = inlined_call_operand.vmem [shape: f32[1,16], index: 6, kind: input, shape index: {}]
  %s7 = inlined_call_operand.hbm [shape: f32[16,16], index: 7, kind: output, shape index: {}]
  %s8 = sld [smem:[#allocation0]]
  $region50: #{_lambda_.1} parent=0
    _
  %s10 = ssub.s32 1, %s8
  %s11 = scalar_select 0, %s10, %s8
  $region1: #{_lambda_.1} parent=0
    #allocation2 [shape = 'u8[8192]{0}', space=vmem, size = 0x2000, scoped, tag = 'input window, operand 0, single buffered']
    #allocation3 [shape = 's32[1]{0}', space=sflag, size = 0x4, scoped, tag = 'scoped memory for _lambda_.1']
    #allocation4 [shape = 's32[1]{0}', space=sflag, size = 0x4, scoped, tag = 'scoped memory for _lambda_.1']
    #allocation5 [shape = 'u8[8192]{0}', space=vmem, size = 0x2000, scoped, tag = 'input window, operand 1, single buffered']
    #allocation6 [shape = 's32[1]{0}', space=sflag, size = 0x4, scoped, tag = 'scoped memory for _lambda_.1']
    #allocation7 [shape = 'u8[16384]{0}', space=vmem, size = 0x4000, scoped, tag = 'input window, operand 3, single buffered']
    #allocation8 [shape = 'u8[8192]{0}', space=vmem, size = 0x2000, scoped, tag = 'output window, operand 0, single buffered']
    %12 = vsyncpa [#allocation3], 0
    %13 = vsyncpa [#allocation6], 0
    %14 = vsyncpa [#allocation4], 0
    // Predicated region
    $region2: #{_lambda_.1} parent=1 // pred_check
      _
    $region3: #{_lambda_.1} parent=1 // pred_check_branch
      %16 = sbr.rel (0) target = $region5
    $region4: #{_lambda_.1} parent=1 // pred_region
      %s18 = ssub.s32 256, 256
      %19 = vsyncadd [#allocation3], %s18
      %s20 = sshll.u32 [#allocation2], 4
      %s21 = int_to_ptr.vmem [resolvable:$true] %s20
      %26 = dma.hbm_to_vmem [thread:$0]  %s0, 256, %s21, [#allocation3], 128, 128, 8
    $region5: #{_lambda_.1} parent=1 // pred_fallthru
      _
    // Predicated region
    $region6: #{_lambda_.1} parent=1 // pred_check
      _
    $region7: #{_lambda_.1} parent=1 // pred_check_branch
      %28 = sbr.rel (0) target = $region9
    $region8: #{_lambda_.1} parent=1 // pred_region
      %s30 = ssub.s32 256, 256
      %31 = vsyncadd [#allocation6], %s30
      %s32 = sshll.u32 [#allocation5], 4
      %s33 = int_to_ptr.vmem [resolvable:$true] %s32
      %38 = dma.hbm_to_vmem [thread:$0]  %s1, 256, %s33, [#allocation6], 64, 64, 4
    $region9: #{_lambda_.1} parent=1 // pred_fallthru
      _
    // Predicated region
    $region10: #{_lambda_.1} parent=1 // pred_check
      _
    $region11: #{_lambda_.1} parent=1 // pred_check_branch
      %40 = sbr.rel (0) target = $region13
    $region12: #{_lambda_.1} parent=1 // pred_region
      _
    $region13: #{_lambda_.1} parent=1 // pred_fallthru
      _
    // Predicated region
    $region14: #{_lambda_.1} parent=1 // pred_check
      _
    $region15: #{_lambda_.1} parent=1 // pred_check_branch
      %42 = sbr.rel (0) target = $region17
    $region16: #{_lambda_.1} parent=1 // pred_region
      %s44 = ssub.s32 512, 512
      %45 = vsyncadd [#allocation6], %s44
      %s46 = sshll.u32 [#allocation7], 4
      %s47 = int_to_ptr.vmem [resolvable:$true] %s46
      %52 = dma.hbm_to_vmem [thread:$0]  %s3, 512, %s47, [#allocation6], 64, 64, 4
    $region17: #{_lambda_.1} parent=1 // pred_fallthru
      _
    // Predicated region
    $region18: #{_lambda_.1} parent=1 // pred_check
      _
    $region19: #{_lambda_.1} parent=1 // pred_check_branch
      %54 = sbr.rel (0) target = $region21
    $region20: #{_lambda_.1} parent=1 // pred_region
      _
    $region21: #{_lambda_.1} parent=1 // pred_fallthru
      _
    // Predicated region
    $region22: #{_lambda_.1} parent=1 // pred_check
      _
    $region23: #{_lambda_.1} parent=1 // pred_check_branch
      %56 = sbr.rel (0) target = $region25
    $region24: #{_lambda_.1} parent=1 // pred_region
      _
    $region25: #{_lambda_.1} parent=1 // pred_fallthru
      _
    // Predicated region
    $region26: #{_lambda_.1} parent=1 // pred_check
      _
    $region27: #{_lambda_.1} parent=1 // pred_check_branch
      %58 = sbr.rel (0) target = $region29
    $region28: #{_lambda_.1} parent=1 // pred_region
      _
    $region29: #{_lambda_.1} parent=1 // pred_fallthru
      _
    // Predicated region
    $region30: #{_lambda_.1} parent=1 // pred_check
      _
    $region31: #{_lambda_.1} parent=1 // pred_check_branch
      %60 = sbr.rel (0) target = $region33
    $region32: #{_lambda_.1} parent=1 // pred_region
      %61 = dma.done [#allocation3], 256
    $region33: #{_lambda_.1} parent=1 // pred_fallthru
      _
    // Predicated region
    $region34: #{_lambda_.1} parent=1 // pred_check
      _
    $region35: #{_lambda_.1} parent=1 // pred_check_branch
      %63 = sbr.rel (0) target = $region37
    $region36: #{_lambda_.1} parent=1 // pred_region
      %64 = dma.done [#allocation6], 256
    $region37: #{_lambda_.1} parent=1 // pred_fallthru
      _
    // Predicated region
    $region38: #{_lambda_.1} parent=1 // pred_check
      _
    $region39: #{_lambda_.1} parent=1 // pred_check_branch
      %66 = sbr.rel (0) target = $region41
    $region40: #{_lambda_.1} parent=1 // pred_region
      %67 = dma.done [#allocation6], 512
    $region41: #{_lambda_.1} parent=1 // pred_fallthru
      _
    %v69 = vld [vmem:[#allocation2] sm:$0xff]
    %v70 = vld [vmem:[#allocation2 + $0x8] sm:$0xff]
    %v71 = vpack.c.bf16 %v70, %v69
    %v72 = vld [vmem:[#allocation5] sm:$0xf]
    %v73 = vld [vmem:[#allocation5 + $0x4] sm:$0xf]
    %v74 = vld [vmem:[#allocation5 + $0x8] sm:$0xf]
    %v75 = vld [vmem:[#allocation5 + $0xc] sm:$0xf]
    %v76 = vld [vmem:[%s2] sm:$0x1]
    %v78 = vlaneseq
    %v79 = vshrl.u32 %v78, 7
    %v80 = vsub.s32 0, %v79
    %v81 = vrot.slane %v76, %v80
    %v87 = vunpack.c.l.b16 %v72
    %v88 = vunpack.c.l.b16 %v73
    %v89 = vunpack.c.l.b16 %v74
    %v90 = vunpack.c.l.b16 %v75
    %v91 = vpack.c.b16 %v88, %v87
    %v92 = vpack.c.b16 %v90, %v89
    %vm95 = vcmask 261120
    %v97 = vsel %vm95, %v71, 0
    %99 = vmatprep.subr.bf16.mxu0 0
    %100 = vmatpush1.bf16.msra.mxu0 %v91
    %101 = vmatprep.subr.bf16.mxu0 0
    %102 = vmatpush1.bf16.msra.mxu0 %v92
    %103 = vmatprep.subr.bf16.mxu0 0
    %104 = vmatpush1.bf16.msra.mxu0 0
    %105 = vmatprep.subr.bf16.mxu0 0
    %106 = vmatpush1.bf16.msra.mxu0 0
    %107 = vmatprep.subr.bf16.mxu0 0
    %108 = vmatpush1.bf16.msra.mxu0 0
    %109 = vmatprep.subr.bf16.mxu0 0
    %110 = vmatpush1.bf16.msra.mxu0 0
    %111 = vmatprep.subr.bf16.mxu0 0
    %112 = vmatpush1.bf16.msra.mxu0 0
    %113 = vmatprep.subr.bf16.mxu0 0
    %114 = vmatpush1.bf16.msra.mxu0 0
    %115 = vmatprep.subr.bf16.mxu0 0
    %116 = vmatpush1.bf16.msra.mxu0 0
    %117 = vmatprep.subr.bf16.mxu0 0
    %118 = vmatpush1.bf16.msra.mxu0 0
    %119 = vmatprep.subr.bf16.mxu0 0
    %120 = vmatpush1.bf16.msra.mxu0 0
    %121 = vmatprep.subr.bf16.mxu0 0
    %122 = vmatpush1.bf16.msra.mxu0 0
    %123 = vmatprep.subr.bf16.mxu0 0
    %124 = vmatpush1.bf16.msra.mxu0 0
    %125 = vmatprep.subr.bf16.mxu0 0
    %126 = vmatpush1.bf16.msra.mxu0 0
    %127 = vmatprep.subr.bf16.mxu0 0
    %128 = vmatpush1.bf16.msra.mxu0 0
    %129 = vmatprep.subr.bf16.mxu0 0
    %130 = vmatpush1.bf16.msra.mxu0 0
    %131 = vmatprep.mubr.bf16.mxu0 0
    %132 = vmatmul.mubr.bf16.gmra.mrb[0].mxu0 %v97
    %v133 = vpop.f32.mrb[0].mxu0
    %v134 = vadd.f32 %v81, %v133
    %v135 = vpop.f32.mrb[0].mxu0
    %v136 = vpop.f32.mrb[0].mxu0
    %v137 = vadd.f32 %v81, %v136
    %v138 = vpop.f32.mrb[0].mxu0
    %139 = vdwg.mxu0
    %v140 = vmax.f32 %v134, 0.0
    %v141 = vmax.f32 %v137, 0.0
    %v142 = vpack.c.bf16 %v141, %v140
    %v143 = vld [vmem:[#allocation7] sm:$0xf]
    %v144 = vld [vmem:[#allocation7 + $0x4] sm:$0xf]
    %v145 = vld [vmem:[#allocation7 + $0x8] sm:$0xf]
    %v146 = vld [vmem:[#allocation7 + $0xc] sm:$0xf]
    %v147 = vld [vmem:[#allocation7 + $0x10] sm:$0xf]
    %v148 = vld [vmem:[#allocation7 + $0x14] sm:$0xf]
    %v149 = vld [vmem:[#allocation7 + $0x18] sm:$0xf]
    %v150 = vld [vmem:[#allocation7 + $0x1c] sm:$0xf]
    %v151 = vld [vmem:[%s4] sm:$0x1]
    %v153 = vlaneseq
    %v154 = vshrl.u32 %v153, 7
    %v155 = vsub.s32 0, %v154
    %v156 = vrot.slane %v151, %v155
    %v166 = vunpack.c.l.b16 %v143
    %v167 = vunpack.c.l.b16 %v144
    %v168 = vunpack.c.l.b16 %v145
    %v169 = vunpack.c.l.b16 %v146
    %v170 = vunpack.c.l.b16 %v147
    %v171 = vunpack.c.l.b16 %v148
    %v172 = vunpack.c.l.b16 %v149
    %v173 = vunpack.c.l.b16 %v150
    %v174 = vpack.c.b16 %v167, %v166
    %v175 = vpack.c.b16 %v169, %v168
    %v176 = vpack.c.b16 %v171, %v170
    %v177 = vpack.c.b16 %v173, %v172
    %vm182 = vcmask 523264
    %v184 = vsel %vm182, %v142, 0
    %186 = vmatprep.subr.bf16.mxu0 0
    %187 = vmatpush1.bf16.msra.mxu0 %v174
    %188 = vmatprep.subr.bf16.mxu0 0
    %189 = vmatpush1.bf16.msra.mxu0 %v175
    %190 = vmatprep.subr.bf16.mxu0 0
    %191 = vmatpush1.bf16.msra.mxu0 %v176
    %192 = vmatprep.subr.bf16.mxu0 0
    %193 = vmatpush1.bf16.msra.mxu0 %v177
    %194 = vmatprep.subr.bf16.mxu0 0
    %195 = vmatpush1.bf16.msra.mxu0 0
    %196 = vmatprep.subr.bf16.mxu0 0
    %197 = vmatpush1.bf16.msra.mxu0 0
    %198 = vmatprep.subr.bf16.mxu0 0
    %199 = vmatpush1.bf16.msra.mxu0 0
    %200 = vmatprep.subr.bf16.mxu0 0
    %201 = vmatpush1.bf16.msra.mxu0 0
    %202 = vmatprep.subr.bf16.mxu0 0
    %203 = vmatpush1.bf16.msra.mxu0 0
    %204 = vmatprep.subr.bf16.mxu0 0
    %205 = vmatpush1.bf16.msra.mxu0 0
    %206 = vmatprep.subr.bf16.mxu0 0
    %207 = vmatpush1.bf16.msra.mxu0 0
    %208 = vmatprep.subr.bf16.mxu0 0
    %209 = vmatpush1.bf16.msra.mxu0 0
    %210 = vmatprep.subr.bf16.mxu0 0
    %211 = vmatpush1.bf16.msra.mxu0 0
    %212 = vmatprep.subr.bf16.mxu0 0
    %213 = vmatpush1.bf16.msra.mxu0 0
    %214 = vmatprep.subr.bf16.mxu0 0
    %215 = vmatpush1.bf16.msra.mxu0 0
    %216 = vmatprep.subr.bf16.mxu0 0
    %217 = vmatpush1.bf16.msra.mxu0 0
    %218 = vmatprep.mubr.bf16.mxu0 0
    %219 = vmatmul.mubr.bf16.gmra.mrb[0].mxu0 %v184
    %v220 = vpop.f32.mrb[0].mxu0
    %v221 = vadd.f32 %v156, %v220
    %v222 = vpop.f32.mrb[0].mxu0
    %v223 = vpop.f32.mrb[0].mxu0
    %v224 = vadd.f32 %v156, %v223
    %v225 = vpop.f32.mrb[0].mxu0
    %226 = vdwg.mxu0
    %v227 = vmax.f32 %v221, 0.0
    %v228 = vmax.f32 %v224, 0.0
    %v229 = vpack.c.bf16 %v228, %v227
    %v230 = vld [vmem:[%s5] sm:$0xf]
    %v231 = vld [vmem:[%s5 + $0x4] sm:$0xf]
    %v232 = vld [vmem:[%s5 + $0x8] sm:$0xf]
    %v233 = vld [vmem:[%s5 + $0xc] sm:$0xf]
    %v234 = vld [vmem:[%s5 + $0x10] sm:$0xf]
    %v235 = vld [vmem:[%s5 + $0x14] sm:$0xf]
    %v236 = vld [vmem:[%s5 + $0x18] sm:$0xf]
    %v237 = vld [vmem:[%s5 + $0x1c] sm:$0xf]
    %v238 = vld [vmem:[%s6] sm:$0x1]
    %v240 = vlaneseq
    %v241 = vshrl.u32 %v240, 7
    %v242 = vsub.s32 0, %v241
    %v243 = vrot.slane %v238, %v242
    %v253 = vunpack.c.l.b16 %v230
    %v254 = vunpack.c.l.b16 %v231
    %v255 = vunpack.c.l.b16 %v232
    %v256 = vunpack.c.l.b16 %v233
    %v257 = vunpack.c.l.b16 %v234
    %v258 = vunpack.c.l.b16 %v235
    %v259 = vunpack.c.l.b16 %v236
    %v260 = vunpack.c.l.b16 %v237
    %v261 = vpack.c.b16 %v254, %v253
    %v262 = vpack.c.b16 %v256, %v255
    %v263 = vpack.c.b16 %v258, %v257
    %v264 = vpack.c.b16 %v260, %v259
    %v270 = vsel %vm182, %v229, 0
    %272 = vmatprep.subr.bf16.mxu0 0
    %273 = vmatpush1.bf16.msra.mxu0 %v261
    %274 = vmatprep.subr.bf16.mxu0 0
    %275 = vmatpush1.bf16.msra.mxu0 %v262
    %276 = vmatprep.subr.bf16.mxu0 0
    %277 = vmatpush1.bf16.msra.mxu0 %v263
    %278 = vmatprep.subr.bf16.mxu0 0
    %279 = vmatpush1.bf16.msra.mxu0 %v264
    %280 = vmatprep.subr.bf16.mxu0 0
    %281 = vmatpush1.bf16.msra.mxu0 0
    %282 = vmatprep.subr.bf16.mxu0 0
    %283 = vmatpush1.bf16.msra.mxu0 0
    %284 = vmatprep.subr.bf16.mxu0 0
    %285 = vmatpush1.bf16.msra.mxu0 0
    %286 = vmatprep.subr.bf16.mxu0 0
    %287 = vmatpush1.bf16.msra.mxu0 0
    %288 = vmatprep.subr.bf16.mxu0 0
    %289 = vmatpush1.bf16.msra.mxu0 0
    %290 = vmatprep.subr.bf16.mxu0 0
    %291 = vmatpush1.bf16.msra.mxu0 0
    %292 = vmatprep.subr.bf16.mxu0 0
    %293 = vmatpush1.bf16.msra.mxu0 0
    %294 = vmatprep.subr.bf16.mxu0 0
    %295 = vmatpush1.bf16.msra.mxu0 0
    %296 = vmatprep.subr.bf16.mxu0 0
    %297 = vmatpush1.bf16.msra.mxu0 0
    %298 = vmatprep.subr.bf16.mxu0 0
    %299 = vmatpush1.bf16.msra.mxu0 0
    %300 = vmatprep.subr.bf16.mxu0 0
    %301 = vmatpush1.bf16.msra.mxu0 0
    %302 = vmatprep.subr.bf16.mxu0 0
    %303 = vmatpush1.bf16.msra.mxu0 0
    %304 = vmatprep.mubr.bf16.mxu0 0
    %305 = vmatmul.mubr.bf16.gmra.mrb[0].mxu0 %v270
    %v306 = vpop.f32.mrb[0].mxu0
    %v307 = vadd.f32 %v243, %v306
    %v308 = vpop.f32.mrb[0].mxu0
    %v309 = vpop.f32.mrb[0].mxu0
    %v310 = vadd.f32 %v243, %v309
    %v311 = vpop.f32.mrb[0].mxu0
    %312 = vdwg.mxu0
    %vm313 = vcmask 130048
    %314 = vst.msk [vmem:[#allocation8] sm:$0xff] %vm313, %v307
    %315 = vst.msk [vmem:[#allocation8 + $0x8] sm:$0xff] %vm313, %v310
    // Predicated region
    $region42: #{_lambda_.1} parent=1 // pred_check
      _
    $region43: #{_lambda_.1} parent=1 // pred_check_branch
      %317 = sbr.rel (0) target = $region45
    $region44: #{_lambda_.1} parent=1 // pred_region
      %s319 = ssub.s32 256, 256
      %320 = vsyncadd [#allocation4], %s319
      %s321 = sshll.u32 [#allocation8], 4
      %s322 = int_to_ptr.vmem [resolvable:$true] %s321
      %327 = dma.vmem_to_hbm [thread:$0]  %s322, 256, %s7, [#allocation4], 128, 128, 8
    $region45: #{_lambda_.1} parent=1 // pred_fallthru
      _
    // Predicated region
    $region46: #{_lambda_.1} parent=1 // pred_check
      _
    $region47: #{_lambda_.1} parent=1 // pred_check_branch
      %329 = sbr.rel (0) target = $region49
    $region48: #{_lambda_.1} parent=1 // pred_region
      %330 = dma.done [#allocation4], 256
    $region49: #{_lambda_.1} parent=1 // pred_fallthru
      _
    %331 = vsyncpa [#allocation3], 1
    %332 = vsyncpa [#allocation6], 1
    %333 = vsyncpa [#allocation4], 1

</llo_original>
